<compile_context>
chip_gen: v5e
topology: v5e:2x2
jax: 0.10.0
libtpu: 0.0.40
codegen_flags: <defaults>
</compile_context>

<pallas_src>
import math
import jax
import jax.numpy as jnp
from jax.experimental import pallas as pl
from jax.experimental.pallas import tpu as pltpu

# ---- ArcFace hyper-parameters (from __init__: s=64.0, margin=0.5) ----------
SCALE = 64.0
MARGIN = 0.5
COS_M = math.cos(MARGIN)
SIN_M = math.sin(MARGIN)
THETA = math.cos(math.pi - MARGIN)
SINMM = math.sin(math.pi - MARGIN) * MARGIN
EASY_MARGIN = False  # matches the module default


def arcface_kernel(logits_ref, labels_ref, out_ref):
    # logits_ref: (TB, TC) tile; labels_ref: (TB, 1) int32 tile (per row block).
    # Always compute in f32 (storage may be bf16).
    t = logits_ref[...].astype(jnp.float32)
    lab = labels_ref[...]                                     # (TB, 1) int32

    # Global class index of each lane: local iota + class-block offset
    # (t.shape[1] is the static class-tile width TC).
    col = (jax.lax.broadcasted_iota(jnp.int32, t.shape, 1)
           + pl.program_id(1) * t.shape[1])
    is_target = (col == lab) & (lab != -1)                    # one-hot target mask

    # Margin-adjusted logit, elementwise on the full tile (VPU/EUP work is
    # free filler under the HBM-bandwidth bottleneck).  Clamp the sqrt arg:
    # cosines may be marginally outside [-1, 1].
    sin_theta = jnp.sqrt(jnp.maximum(0.0, 1.0 - t * t))
    cos_theta_m = t * COS_M - sin_theta * SIN_M
    if EASY_MARGIN:
        final_target = jnp.where(t > 0.0, cos_theta_m, t)
    else:
        final_target = jnp.where(t > THETA, cos_theta_m, t - SINMM)

    out_ref[...] = (jnp.where(is_target, final_target, t) * SCALE).astype(out_ref.dtype)


def _round_up(x: int, m: int) -> int:
    return -(-x // m) * m


def _choose_tiles(B: int, C: int, itemsize: int,
                  *, target_block_bytes: int = 8 * 1024 * 1024,
                  tc_cap: int = 16384):
    """Pick (TB, TC) for a cdiv grid (remainder tiles allowed).

    Class tile: as wide as possible (lane-dense, wide contiguous DMA
    segments, unmasked vst) up to `tc_cap` lanes.  Row tile: fills
    ~target_block_bytes per block, multiple of the dtype sublane unit, then
    shrunk if needed so the total block count is even (v7x megacore split).
    """
    row_unit = max(8, 32 // max(1, itemsize))       # f32 -> 8, bf16 -> 16
    TC = min(_round_up(C, 128), tc_cap)
    rows = max(row_unit, target_block_bytes // max(1, TC * itemsize))
    TB = max(row_unit, (rows // row_unit) * row_unit)
    TB = min(TB, _round_up(B, row_unit))

    # v7x: prefer an even number of total blocks so both TensorCores get work.
    for _ in range(8):
        total_blocks = (-(-B // TB)) * (-(-C // TC))
        if total_blocks % 2 == 0 or TB <= row_unit:
            break
        new_tb = max(row_unit, ((TB // 2) // row_unit) * row_unit)
        if new_tb == TB:
            break
        TB = new_tb
    return TB, TC


def arcface_forward(logits: jax.Array, labels: jax.Array, *,
                    out_dtype=None, in_place: bool = True,
                    tb: int | None = None, tc: int | None = None,
                    target_block_bytes: int = 8 * 1024 * 1024) -> jax.Array:
    """logits: (B, C) float32/bfloat16, labels: (B,) int (-1 = ignore row)."""
    B, C = logits.shape
    out_dtype = logits.dtype if out_dtype is None else jnp.dtype(out_dtype)
    in_size = jnp.dtype(logits.dtype).itemsize
    out_size = jnp.dtype(out_dtype).itemsize
    itemsize = max(in_size, out_size)

    auto_tb, auto_tc = _choose_tiles(B, C, itemsize,
                                     target_block_bytes=target_block_bytes)
    TB = auto_tb if tb is None else tb
    TC = auto_tc if tc is None else tc

    labels2d = labels.reshape(B, 1).astype(jnp.int32)
    grid = (pl.cdiv(B, TB), pl.cdiv(C, TC))     # class axis innermost (labels revisit)

    # In-place update of the logits buffer (like the PyTorch module) when the
    # storage dtype is unchanged; avoids a second (B, C) HBM allocation.
    alias = {0: 0} if (in_place and out_dtype == logits.dtype) else {}

    return pl.pallas_call(
        arcface_kernel,
        out_shape=jax.ShapeDtypeStruct((B, C), out_dtype),
        grid_spec=pltpu.PrefetchScalarGridSpec(
            num_scalar_prefetch=0,
            grid=grid,
            in_specs=[
                pl.BlockSpec((TB, TC), lambda i, j: (i, j)),
                pl.BlockSpec((TB, 1), lambda i, j: (i, 0)),
            ],
            out_specs=pl.BlockSpec((TB, TC), lambda i, j: (i, j)),
        ),
        input_output_aliases=alias,
        compiler_params=pltpu.CompilerParams(
            dimension_semantics=("parallel", "parallel"),
            # ~8 MiB blocks x (in + out) x double-buffering ~= 32 MiB resident:
            # explicit limit so v5e's 16 MiB scoped default doesn't reject it,
            # while leaving headroom under v7x's 64 MiB physical VMEM.
            vmem_limit_bytes=48 * 1024 * 1024,
        ),
    )(logits, labels2d)


def arcface_reference(logits, labels):
    # plain-JAX reference with identical semantics (for verification)
    t = logits.astype(jnp.float32)
    mask = ((jnp.arange(logits.shape[1])[None, :] == labels[:, None])
            & (labels[:, None] != -1))
    sin_theta = jnp.sqrt(jnp.maximum(0.0, 1.0 - t * t))
    cos_theta_m = t * COS_M - sin_theta * SIN_M
    final = jnp.where(t > THETA, cos_theta_m, t - SINMM)
    return jnp.where(mask, final, t) * SCALE


if __name__ == "__main__":
    key = jax.random.PRNGKey(0)

    # --- test 1: f32, forced multi-block 2-D grid (class-offset iota path) ---
    k1, k2 = jax.random.split(key)
    B, C = 16, 256
    logits = jnp.tanh(jax.random.normal(k1, (B, C), dtype=jnp.float32))
    labels = jax.random.randint(k2, (B,), 0, C, dtype=jnp.int32)
    labels = labels.at[0].set(-1).at[5].set(-1)   # ignored rows, like PyTorch path

    out = arcface_forward(logits, labels, tb=8, tc=128)       # grid = (2, 2)
    jax.block_until_ready(out)
    ref = arcface_reference(logits, labels)
    assert jnp.allclose(out, ref, atol=1e-5, rtol=1e-5), "mismatch (test 1)"

    # --- test 2: f32, auto tiles + remainder (padded) tiles on the row axis --
    k3, k4 = jax.random.split(k1)
    B2, C2 = 20, 384                              # B not a multiple of 8
    logits2 = jnp.tanh(jax.random.normal(k3, (B2, C2), dtype=jnp.float32))
    labels2 = jax.random.randint(k4, (B2,), 0, C2, dtype=jnp.int32)
    labels2 = labels2.at[3].set(-1)

    out2 = arcface_forward(logits2, labels2)      # cdiv grid with padded tiles
    jax.block_until_ready(out2)
    ref2 = arcface_reference(logits2, labels2)
    assert jnp.allclose(out2, ref2, atol=1e-5, rtol=1e-5), "mismatch (test 2)"

    # --- test 3: bf16 in / bf16 out (f32 math inside, halved HBM traffic) ----
    k5, k6 = jax.random.split(k3)
    B3, C3 = 32, 512
    logits3 = jnp.tanh(jax.random.normal(k5, (B3, C3), dtype=jnp.float32)).astype(jnp.bfloat16)
    labels3 = jax.random.randint(k6, (B3,), 0, C3, dtype=jnp.int32)
    labels3 = labels3.at[7].set(-1)

    out3 = arcface_forward(logits3, labels3)
    jax.block_until_ready(out3)
    ref3 = arcface_reference(logits3, labels3)
    assert jnp.allclose(out3.astype(jnp.float32), ref3, atol=0.6, rtol=2e-2), "mismatch (test 3)"

    # --- test 4: f32 in -> bf16 out (write-traffic halving path, no alias) ---
    out4 = arcface_forward(logits, labels, out_dtype=jnp.bfloat16)
    jax.block_until_ready(out4)
    assert jnp.allclose(out4.astype(jnp.float32), ref, atol=0.6, rtol=2e-2), "mismatch (test 4)"

    print("KERNEL_OK")
</pallas_src>

<mosaic_0001>
module attributes {stable_mosaic.version = 11 : i64} {
  func.func @arcface_kernel(%arg0: i32, %arg1: i32, %arg2: memref<8x128xf32, #tpu.memory_space<vmem>>, %arg3: memref<8x1xi32, #tpu.memory_space<vmem>>, %arg4: memref<8x128xf32, #tpu.memory_space<vmem>>) attributes {dimension_semantics = [#tpu.dimension_semantics<parallel>, #tpu.dimension_semantics<parallel>], iteration_bounds = array<i64: 2, 2>, scalar_prefetch = 0 : i64, scratch_operands = 0 : i64, tpu.core_type = #tpu.core_type<tc>, window_params = [{transform_indices = @transform_0, window_bounds = array<i64: 8, 128>}, {transform_indices = @transform_1, window_bounds = array<i64: 8, 1>}, {transform_indices = @transform_2, window_bounds = array<i64: 8, 128>}]} {
    %c0 = arith.constant 0 : index
    %c0_0 = arith.constant 0 : index
    %0 = vector.load %arg2[%c0, %c0_0] : memref<8x128xf32, #tpu.memory_space<vmem>>, vector<8x128xf32>
    %c0_1 = arith.constant 0 : index
    %c0_2 = arith.constant 0 : index
    %1 = vector.load %arg3[%c0_1, %c0_2] : memref<8x1xi32, #tpu.memory_space<vmem>>, vector<8x1xi32>
    %2 = tpu.iota {dimensions = array<i32: 1>} : vector<8x128xi32>
    %c128_i32 = arith.constant 128 : i32
    %3 = arith.muli %arg1, %c128_i32 : i32
    %4 = vector.broadcast %3 : i32 to vector<8x128xi32>
    %5 = arith.addi %2, %4 : vector<8x128xi32>
    %6 = vector.broadcast %1 : vector<8x1xi32> to vector<8x128xi32>
    %7 = arith.cmpi eq, %5, %6 : vector<8x128xi32>
    %c-1_i32 = arith.constant -1 : i32
    %8 = vector.broadcast %c-1_i32 : i32 to vector<8x1xi32>
    %9 = arith.cmpi ne, %1, %8 : vector<8x1xi32>
    %10 = vector.broadcast %9 : vector<8x1xi1> to vector<8x128xi1>
    %11 = arith.andi %7, %10 : vector<8x128xi1>
    %12 = arith.mulf %0, %0 : vector<8x128xf32>
    %cst = arith.constant 1.000000e+00 : f32
    %13 = vector.broadcast %cst : f32 to vector<8x128xf32>
    %14 = arith.subf %13, %12 : vector<8x128xf32>
    %cst_3 = arith.constant 0.000000e+00 : f32
    %15 = vector.broadcast %cst_3 : f32 to vector<8x128xf32>
    %16 = arith.maximumf %15, %14 : vector<8x128xf32>
    %17 = math.sqrt %16 : vector<8x128xf32>
    %cst_4 = arith.constant 0.87758255 : f32
    %18 = vector.broadcast %cst_4 : f32 to vector<8x128xf32>
    %19 = arith.mulf %0, %18 : vector<8x128xf32>
    %cst_5 = arith.constant 0.47942555 : f32
    %20 = vector.broadcast %cst_5 : f32 to vector<8x128xf32>
    %21 = arith.mulf %17, %20 : vector<8x128xf32>
    %22 = arith.subf %19, %21 : vector<8x128xf32>
    %cst_6 = arith.constant -0.87758255 : f32
    %23 = vector.broadcast %cst_6 : f32 to vector<8x128xf32>
    %24 = arith.cmpf ogt, %0, %23 : vector<8x128xf32>
    %cst_7 = arith.constant 0.239712775 : f32
    %25 = vector.broadcast %cst_7 : f32 to vector<8x128xf32>
    %26 = arith.subf %0, %25 : vector<8x128xf32>
    %27 = arith.select %24, %22, %26 : vector<8x128xi1>, vector<8x128xf32>
    %28 = arith.select %11, %27, %0 : vector<8x128xi1>, vector<8x128xf32>
    %cst_8 = arith.constant 6.400000e+01 : f32
    %29 = vector.broadcast %cst_8 : f32 to vector<8x128xf32>
    %30 = arith.mulf %28, %29 : vector<8x128xf32>
    %c0_9 = arith.constant 0 : index
    %c0_10 = arith.constant 0 : index
    %31 = vector.load %arg4[%c0_9, %c0_10] : memref<8x128xf32, #tpu.memory_space<vmem>>, vector<8x128xf32>
    tpu.vector_store %arg4[%c0_9, %c0_10], %30 {strides = array<i32>} : memref<8x128xf32, #tpu.memory_space<vmem>>, vector<8x128xf32>,
    return
  }
  func.func @transform_0(%arg0: i32, %arg1: i32) -> (i32, i32) {
    %c0_i32 = arith.constant 0 : i32
    return %arg0, %arg1 : i32, i32
  }
  func.func @transform_1(%arg0: i32, %arg1: i32) -> (i32, i32) {
    %c0_i32 = arith.constant 0 : i32
    %c0_i32_0 = arith.constant 0 : i32
    return %arg0, %c0_i32 : i32, i32
  }
  func.func @transform_2(%arg0: i32, %arg1: i32) -> (i32, i32) {
    %c0_i32 = arith.constant 0 : i32
    return %arg0, %arg1 : i32, i32
  }
}

</mosaic_0001>

<llo_original>
// kernel: tpu_custom_call.1
$region0: #{tpu_custom_call.1}
  #allocation0 [shape = 'u32[]', space=smem, size = 0x4, offset = 0x4, fixed_abs, tag = 'smem constant byte address 0x4 - core index']
  #allocation1 [shape = 'u32[72,128]{1,0:T(1,128)}', space=vmem, size = 0x9000, scoped, tag = 'internal scratch']
  %s0 = inlined_call_operand.hbm [shape: f32[16,256], index: 0, kind: input, shape index: {}, may-alias: {0,2}]
  %s1 = inlined_call_operand.vmem [shape: s32[16,1], index: 1, kind: input, shape index: {}]
  %s2 = inlined_call_operand.hbm [shape: f32[16,256], index: 2, kind: output, shape index: {}, may-alias: {0,2}]
  %s3 = sld [smem:[#allocation0]]
  $region45: #{tpu_custom_call.1} parent=0
    _
  %s5 = ssub.s32 1, %s3
  %s6 = scalar_select 0, %s5, %s3
  $region1: #{tpu_custom_call.1} parent=0
    #allocation2 [shape = 'u8[8192]{0}', space=vmem, size = 0x2000, scoped, tag = 'input window, operand 0']
    #allocation3 [shape = 's32[2]{0}', space=sflag, size = 0x8, scoped, tag = 'scoped memory for tpu_custom_call.1']
    #allocation4 [shape = 's32[2]{0}', space=sflag, size = 0x8, scoped, tag = 'scoped memory for tpu_custom_call.1']
    #allocation5 [shape = 'u8[8192]{0}', space=vmem, size = 0x2000, scoped, tag = 'output window, operand 0']
    %7 = vsyncpa [#allocation3], 0
    %s8 = scalar_lea.sflag [#allocation3], 1
    %9 = vsyncpa %s8, 0
    %10 = vsyncpa [#allocation4], 0
    %s11 = scalar_lea.sflag [#allocation4], 1
    %12 = vsyncpa %s11, 0
    loop: start=0, step=1, limit=6
    $region2: #{tpu_custom_call.1} parent=1 // loop_pre_header
      _
    $region3: #{tpu_custom_call.1} parent=1 // loop_header
      %s14 = sphi 0, %s18
      %p15 = scmp.ge.s32.totalorder %s14, 6
      %s21 = sphi 0, %s33
      %s22 = sphi 0, %s29
      %s23 = sphi 0, %s21
      %s24 = sphi 0, %s22
      %s25 = sphi 0, %s23
      %s26 = sphi 0, %s24
      %s38 = sphi 0, %s40
      %s41 = sphi 0, %s38
      %s42 = sphi 0, %s41
      %s58 = sphi 0, %s42
      %s64 = sphi 0, %s66
      %s67 = sphi 0, %s64
      %s68 = sphi 0, %s67
      %s84 = sphi 0, %s68
      %s92 = sphi 0, %s94
      %s95 = sphi 0, %s92
      %s96 = sphi 0, %s95
      %s112 = sphi 0, %s96
    $region4: #{tpu_custom_call.1} parent=1 // loop_header_branch
      %17 = sbr.rel (%p15) target = $region8
    $region5: #{tpu_custom_call.1} parent=1 // loop_body
      %s19 = ssub.s32 %s14, 1
      %s20 = ssub.s32 %s14, 2
      %s27 = sadd.s32 1, %s22
      %p28 = scmp.ge.s32.totalorder %s27, 2
      %s29 = scalar_select %p28, 0, %s27
      %s30 = sadd.s32 1, %s21
      %s31 = scalar_select %p28, %s30, %s21
      %p32 = scmp.ge.s32.totalorder %s31, 2
      %s33 = scalar_select %p32, 0, %s31
      %s34 = ssub.s32 %s21, %s33
      %s35 = ssub.s32 %s22, %s29
      %s36 = sor.u32 %s34, %s35
      %p37 = scmp.eq.s32.totalorder %s36, 0
      %s39 = sadd.s32 %s38, 1
      %s40 = scalar_select %p37, %s38, %s39
      %p43 = pneg %p37
      %p44 = scmp.eq.s32.totalorder %s14, 3
      %p45 = por %p43, %p44
      %p46 = scmp.ne.s32.totalorder %s38, %s41
      %p47 = scmp.eq.s32.totalorder %s14, 0
      %p48 = por %p46, %p47
      %p49 = scmp.ne.s32.totalorder %s38, %s41
      %p50 = scmp.eq.s32.totalorder %s19, 3
      %p51 = por %p49, %p50
      %p52 = scmp.ne.s32.totalorder %s41, %s42
      %p53 = scmp.eq.s32.totalorder %s19, 0
      %p54 = por %p52, %p53
      %p55 = scmp.ne.s32.totalorder %s41, %s42
      %p56 = scmp.eq.s32.totalorder %s20, 3
      %p57 = por %p55, %p56
      %p59 = scmp.ne.s32.totalorder %s42, %s58
      %p60 = scmp.eq.s32.totalorder %s20, 0
      %p61 = por %p59, %p60
      %s62 = ssub.s32 %s21, %s33
      %p63 = scmp.eq.s32.totalorder %s62, 0
      %s65 = sadd.s32 %s64, 1
      %s66 = scalar_select %p63, %s64, %s65
      %p69 = pneg %p63
      %p70 = scmp.eq.s32.totalorder %s14, 3
      %p71 = por %p69, %p70
      %p72 = scmp.ne.s32.totalorder %s64, %s67
      %p73 = scmp.eq.s32.totalorder %s14, 0
      %p74 = por %p72, %p73
      %p75 = scmp.ne.s32.totalorder %s64, %s67
      %p76 = scmp.eq.s32.totalorder %s19, 3
      %p77 = por %p75, %p76
      %p78 = scmp.ne.s32.totalorder %s67, %s68
      %p79 = scmp.eq.s32.totalorder %s19, 0
      %p80 = por %p78, %p79
      %p81 = scmp.ne.s32.totalorder %s67, %s68
      %p82 = scmp.eq.s32.totalorder %s20, 3
      %p83 = por %p81, %p82
      %p85 = scmp.ne.s32.totalorder %s68, %s84
      %p86 = scmp.eq.s32.totalorder %s20, 0
      %p87 = por %p85, %p86
      %s88 = ssub.s32 %s21, %s33
      %s89 = ssub.s32 %s22, %s29
      %s90 = sor.u32 %s88, %s89
      %p91 = scmp.eq.s32.totalorder %s90, 0
      %s93 = sadd.s32 %s92, 1
      %s94 = scalar_select %p91, %s92, %s93
      %p97 = pneg %p91
      %p98 = scmp.eq.s32.totalorder %s14, 3
      %p99 = por %p97, %p98
      %p100 = scmp.ne.s32.totalorder %s92, %s95
      %p101 = scmp.eq.s32.totalorder %s14, 0
      %p102 = por %p100, %p101
      %p103 = scmp.ne.s32.totalorder %s92, %s95
      %p104 = scmp.eq.s32.totalorder %s19, 3
      %p105 = por %p103, %p104
      %p106 = scmp.ne.s32.totalorder %s95, %s96
      %p107 = scmp.eq.s32.totalorder %s19, 0
      %p108 = por %p106, %p107
      %p109 = scmp.ne.s32.totalorder %s95, %s96
      %p110 = scmp.eq.s32.totalorder %s20, 3
      %p111 = por %p109, %p110
      %p113 = scmp.ne.s32.totalorder %s96, %s112
      %p114 = scmp.eq.s32.totalorder %s20, 0
      %p115 = por %p113, %p114
      %p116 = scmp.le.s32.totalorder 1, %s14
      %p117 = scmp.lt.s32.totalorder %s14, 5
      %p118 = pnand %p116, %p117
      %p119 = pneg %p118
      // Predicated region
      $region9: #{tpu_custom_call.1} parent=5 // pred_check
        _
      $region10: #{tpu_custom_call.1} parent=5 // pred_check_branch
        %121 = sbr.rel (%p118) target = $region12
      $region11: #{tpu_custom_call.1} parent=5 // pred_region
        %s122 = ssub.s32 %s14, 1
      $region12: #{tpu_custom_call.1} parent=5 // pred_fallthru
        _
      %p123 = scmp.lt.s32.totalorder %s14, 4
      // Predicated region
      $region13: #{tpu_custom_call.1} parent=5 // pred_check
        %p124 = pneg %p123
      $region14: #{tpu_custom_call.1} parent=5 // pred_check_branch
        %126 = sbr.rel (%p124) target = $region16
      $region15: #{tpu_custom_call.1} parent=5 // pred_region
        // Predicated region
        $region17: #{tpu_custom_call.1} parent=15 // pred_check
          %p127 = pneg %p48
        $region18: #{tpu_custom_call.1} parent=15 // pred_check_branch
          %129 = sbr.rel (%p127) target = $region20
        $region19: #{tpu_custom_call.1} parent=15 // pred_region
          %s130 = sand.u32 %s38, 1
          %s131 = scalar_lea.sflag [#allocation3], %s130
          %s132 = sand.u32 %s38, 1
          %s133 = smul.addr %s132, 8
          %s134 = scalar_lea.vmem [#allocation2], %s133
          %136 = vsyncadd %s131, 0
          %s137 = smul.addr %s21, 2
          %s138 = sadd.s32 %s22, %s137
          %s139 = smul.addr %s138, 8
          %s140 = scalar_lea.hbm %s0, %s139
          %s142 = sshll.u32 %s140, 4
          %s143 = int_to_ptr.hbm [resolvable:$true] %s142
          %s144 = sshll.u32 %s134, 4
          %s145 = int_to_ptr.vmem [resolvable:$true] %s144
          %147 = dma.hbm_to_vmem [thread:$0]  %s143, 128, %s145, %s131
        $region20: #{tpu_custom_call.1} parent=15 // pred_fallthru
          _
        // Predicated region
        $region21: #{tpu_custom_call.1} parent=15 // pred_check
          %p148 = pneg %p74
        $region22: #{tpu_custom_call.1} parent=15 // pred_check_branch
          %150 = sbr.rel (%p148) target = $region24
        $region23: #{tpu_custom_call.1} parent=15 // pred_region
          %p151 = scmp.lt.s32.totalorder %s21, 1
          %s152 = scalar_select %p151, %s21, 1
          %s153 = smul.addr %s152, 8
          %s154 = scalar_lea.vmem %s1, %s153
        $region24: #{tpu_custom_call.1} parent=15 // pred_fallthru
          _
      $region16: #{tpu_custom_call.1} parent=5 // pred_fallthru
        _
      %p155 = scmp.le.s32.totalorder 1, %s14
      %p156 = scmp.lt.s32.totalorder %s14, 5
      %p157 = pnand %p155, %p156
      %p158 = pneg %p157
      // Predicated region
      $region25: #{tpu_custom_call.1} parent=5 // pred_check
        _
      $region26: #{tpu_custom_call.1} parent=5 // pred_check_branch
        %160 = sbr.rel (%p157) target = $region28
      $region27: #{tpu_custom_call.1} parent=5 // pred_region
        %s161 = ssub.s32 %s14, 1
        %s162 = sand.u32 %s41, 1
        %s163 = scalar_lea.sflag [#allocation3], %s162
        %s164 = sand.u32 %s41, 1
        %s165 = smul.addr %s164, 8
        %s166 = scalar_lea.vmem [#allocation2], %s165
        // Predicated region
        $region29: #{tpu_custom_call.1} parent=27 // pred_check
          %p167 = pneg %p54
        $region30: #{tpu_custom_call.1} parent=27 // pred_check_branch
          %169 = sbr.rel (%p167) target = $region32
        $region31: #{tpu_custom_call.1} parent=27 // pred_region
          %171 = dma.done %s163, 128
        $region32: #{tpu_custom_call.1} parent=27 // pred_fallthru
          _
        %s172 = sand.u32 %s41, 1
        %s173 = scalar_lea.sflag [#allocation3], %s172
        %s174 = sand.u32 %s41, 1
        %s175 = smul.addr %s174, 8
        %s176 = scalar_lea.vmem [#allocation2], %s175
        %p177 = pneg %p54
        %p178 = pneg %p51
        %p179 = scmp.lt.s32.totalorder %s23, 1
        %s180 = scalar_select %p179, %s23, 1
        %s181 = smul.addr %s180, 8
        %s182 = scalar_lea.vmem %s1, %s181
        %p183 = pneg %p80
        %p184 = pneg %p77
        %p185 = pneg %p108
        %p186 = pneg %p105
        %s187 = sand.u32 %s95, 1
        %s188 = scalar_lea.sflag [#allocation4], %s187
        %s189 = sand.u32 %s95, 1
        %s190 = smul.addr %s189, 8
        %s191 = scalar_lea.vmem [#allocation5], %s190
        %p192 = scmp.lt.s32.totalorder %s23, 1
        %s193 = scalar_select %p192, %s23, 1
        %s194 = smul.addr %s193, 8
        %s195 = scalar_lea.vmem %s1, %s194
        %v196 = vld [vmem:[%s166] sm:$0xff]
        %v197 = vld [vmem:[%s195] sm:$0xff]
        %v198 = vlaneseq
        %v199 = vand.u32 %v198, 127
        %s200 = smul.u32 %s24, 128
        %v201 = vstv %s200
        %v202 = vadd.s32 %v199, %v201
        %203 = vset.pattern.permute.xlu0 0
        %204 = vperm.xlu0 %203, %v197
        %v205 = vpop.permute.xlu0 %204
        %vm206 = vcmp.eq.s32.totalorder %v202, %v205
        %vm207 = vcmp.ne.s32.totalorder %v197, 4294967295
        %v208 = vsel %vm207, 1, 0
        %209 = vset.pattern.permute.xlu0 0
        %210 = vperm.xlu0 %209, %v208
        %v211 = vpop.permute.xlu0 %210
        %vm212 = vcmp.eq.s32.totalorder %v211, 1
        %vm213 = vmand %vm206, %vm212
        %v214 = vmul.f32 %v196, %v196
        %v215 = vsub.f32 1.0, %v214
        %v216 = vmax.f32 %v215, 0.0
        %v217 = vrsqrt.pop %v216
        %v218 = vmul.f32 %v217, %v216
        %v219 = vmul.f32 %v218, %v217
        %v220 = vmul.f32 0.5, %v219
        %v221 = vsub.f32 1.5, %v220
        %v222 = vmul.f32 %v217, %v221
        %v223 = vmul.f32 %v216, %v222
        %vm224 = vcmp.eq.f32.partialorder %v216, inf
        %v225 = vsel %vm224, %v216, %v223
        %vm226 = vcmp.eq.f32.partialorder %v216, 0.0
        %v227 = vand.u32 %v216, 2147483648
        %v228 = vsel %vm226, %v227, %v225
        %v229 = vmul.f32 %v196, 0.87758255
        %v230 = vmul.f32 %v228, 0.47942555
        %v231 = vsub.f32 %v229, %v230
        %vm232 = vcmp.gt.f32.partialorder %v196, -0.87758255
        %v233 = vsub.f32 %v196, 0.23971277
        %v234 = vsel %vm232, %v231, %v233
        %v235 = vsel %vm213, %v234, %v196
        %v236 = vmul.f32 %v235, 64.0
        %237 = vst [vmem:[%s191] sm:$0xff] %v236
        %s238 = sand.u32 %s95, 1
        %s239 = scalar_lea.sflag [#allocation4], %s238
        %s240 = sand.u32 %s95, 1
        %s241 = smul.addr %s240, 8
        %s242 = scalar_lea.vmem [#allocation5], %s241
        // Predicated region
        $region33: #{tpu_custom_call.1} parent=27 // pred_check
          %p243 = pneg %p105
        $region34: #{tpu_custom_call.1} parent=27 // pred_check_branch
          %245 = sbr.rel (%p243) target = $region36
        $region35: #{tpu_custom_call.1} parent=27 // pred_region
          %247 = vsyncadd %s239, 0
          %s248 = smul.addr %s23, 2
          %s249 = sadd.s32 %s24, %s248
          %s250 = smul.addr %s249, 8
          %s251 = scalar_lea.hbm %s2, %s250
          %s253 = sshll.u32 %s242, 4
          %s254 = int_to_ptr.vmem [resolvable:$true] %s253
          %s255 = sshll.u32 %s251, 4
          %s256 = int_to_ptr.hbm [resolvable:$true] %s255
          %258 = dma.vmem_to_hbm [thread:$0]  %s254, 128, %s256, %s239
        $region36: #{tpu_custom_call.1} parent=27 // pred_fallthru
          _
      $region28: #{tpu_custom_call.1} parent=5 // pred_fallthru
        _
      %p259 = scmp.le.s32.totalorder 2, %s14
      // Predicated region
      $region37: #{tpu_custom_call.1} parent=5 // pred_check
        %p260 = pneg %p259
      $region38: #{tpu_custom_call.1} parent=5 // pred_check_branch
        %262 = sbr.rel (%p260) target = $region40
      $region39: #{tpu_custom_call.1} parent=5 // pred_region
        %s263 = ssub.s32 %s14, 2
        // Predicated region
        $region41: #{tpu_custom_call.1} parent=39 // pred_check
          %p264 = pneg %p111
        $region42: #{tpu_custom_call.1} parent=39 // pred_check_branch
          %266 = sbr.rel (%p264) target = $region44
        $region43: #{tpu_custom_call.1} parent=39 // pred_region
          %s267 = sand.u32 %s96, 1
          %s268 = scalar_lea.sflag [#allocation4], %s267
          %s269 = sand.u32 %s96, 1
          %s270 = smul.addr %s269, 8
          %s271 = scalar_lea.vmem [#allocation5], %s270
          %273 = dma.done %s268, 128
        $region44: #{tpu_custom_call.1} parent=39 // pred_fallthru
          _
      $region40: #{tpu_custom_call.1} parent=5 // pred_fallthru
        _
    $region6: #{tpu_custom_call.1} parent=1 // loop_footer
      %s18 = sadd.s32 1, %s14
    $region7: #{tpu_custom_call.1} parent=1 // loop_footer_branch
      %13 = sbr.rel target = $region3
    $region8: #{tpu_custom_call.1} parent=1 // loop_exit
      _
    %274 = vsyncpa [#allocation3], 1
    %s275 = scalar_lea.sflag [#allocation3], 1
    %276 = vsyncpa %s275, 1
    %277 = vsyncpa [#allocation4], 1
    %s278 = scalar_lea.sflag [#allocation4], 1
    %279 = vsyncpa %s278, 1

</llo_original>
